<compile_context>
chip_gen: v7x
topology: tpu7x:2x2x1
jax: 0.10.0
libtpu: 0.0.40
codegen_flags: <defaults>
</compile_context>

<pallas_src>
import functools

import jax
import jax.numpy as jnp
import numpy as np
from jax import lax
from jax.experimental import pallas as pl
from jax.experimental.pallas import tpu as pltpu


# ----------------------------------------------------------------------------
# Fused kernel: streamed feature reduction + in-epilogue Lloyd's k-means.
#   x block:   (B, Sc, C)  native dtype (cast to f32 on load)
#   output:    (1, C)      int32   cluster assignment per channel
#   scratch:   s1/s2/sd/x0 (1, C) f32   sum(x-x0), sum((x-x0)^2), sum|dx|, shift
#              carry       (B, C) f32   previous chunk's last time step
# ----------------------------------------------------------------------------
def _fused_kernel(x_ref, assign_ref,
                  s1_ref, s2_ref, sd_ref, x0_ref, carry_ref, *,
                  seq_len, num_clusters, n_iters, n_rows, n_diff_rows):
    step = pl.program_id(0)
    last = pl.num_programs(0) - 1

    xf = x_ref[...].astype(jnp.float32)              # (B, Sc, C)
    B, Sc, C = xf.shape
    K = num_clusters

    # ---- init accumulators / per-channel shift / seq-boundary carry --------
    @pl.when(step == 0)
    def _init():
        s1_ref[...] = jnp.zeros_like(s1_ref)
        s2_ref[...] = jnp.zeros_like(s2_ref)
        sd_ref[...] = jnp.zeros_like(sd_ref)
        x0_ref[...] = xf[0:1, 0, :]                  # shift for stable moments
        carry_ref[...] = xf[:, 0, :]                 # step-0 boundary diff == 0

    # Rows of this block that are inside the real sequence (tail block may be
    # partially out-of-bounds; OOB data is discarded via select, never summed).
    valid = jnp.minimum(seq_len - step * Sc, Sc)
    row = lax.broadcasted_iota(jnp.int32, (B, Sc, C), 1)
    row_ok = row < valid

    # ---- shifted first/second moments (VPU only) ---------------------------
    xs = jnp.where(row_ok, xf - x0_ref[...], 0.0)
    s1_ref[...] += jnp.sum(xs, axis=(0, 1))[None, :]
    s2_ref[...] += jnp.sum(xs * xs, axis=(0, 1))[None, :]

    # ---- |diff| along seq: XLU roll on a 2-D view (no sublane-offset slices)
    if Sc % 8 == 0:
        prev = pltpu.roll(xf.reshape(B * Sc, C), shift=1, axis=0).reshape(B, Sc, C)
        d_in = jnp.where(jnp.logical_and(row >= 1, row_ok),
                         jnp.abs(xf - prev), 0.0)
        sd_in = jnp.sum(d_in, axis=(0, 1))           # interior diffs (rows >= 1)
    else:
        # Tiny/odd-S fallback: single full-S block (Sc == S), slice-based diff.
        sd_in = jnp.sum(jnp.abs(xf[:, 1:, :] - xf[:, :-1, :]), axis=(0, 1))
    bd = jnp.abs(xf[:, 0, :] - carry_ref[...])       # exact cross-chunk diff
    sd_ref[...] += (sd_in + jnp.sum(bd, axis=0))[None, :]

    carry_ref[...] = xf[:, Sc - 1, :]

    # ---- epilogue: finalize features + Lloyd's k-means (VPU only) ----------
    @pl.when(step == last)
    def _finalize():
        inv_n = 1.0 / float(n_rows)
        m_s = s1_ref[...] * inv_n                    # shifted mean     (1, C)
        mean = x0_ref[...] + m_s
        var = jnp.maximum(s2_ref[...] * inv_n - m_s * m_s, 0.0)
        std = jnp.sqrt(var)                          # ddof=0, like np.std
        mad = sd_ref[...] * (1.0 / float(n_diff_rows))
        feats = (mean, std, mad)                     # F = 3 lane-dense rows

        k_iota = lax.broadcasted_iota(jnp.int32, (K, C), 0)
        c_iota = lax.broadcasted_iota(jnp.int32, (K, C), 1)

        # Deterministic init: centroid k = features of channel k.
        sel = (c_iota == k_iota).astype(jnp.float32)          # (K, C) one-hot
        cent0 = tuple(jnp.sum(sel * f, axis=1, keepdims=True) for f in feats)

        def assign_from(cent):                       # cent: 3 x (K, 1)
            dist = jnp.zeros((K, C), jnp.float32)
            for cf, ff in zip(cent, feats):          # unrolled over F=3
                diff = cf - ff                       # (K, C) broadcast
                dist = dist + diff * diff
            minv = jnp.min(dist, axis=0, keepdims=True)        # (1, C)
            cand = jnp.where(dist <= minv, k_iota, K)          # first-min wins
            return jnp.min(cand, axis=0, keepdims=True)        # (1, C) int32

        def lloyd_body(_, cent):
            a = assign_from(cent)
            onehot = (a == k_iota).astype(jnp.float32)         # (K, C)
            counts = jnp.sum(onehot, axis=1, keepdims=True)    # (K, 1)
            denom = jnp.maximum(counts, 1.0)
            return tuple(
                jnp.where(counts > 0.0,
                          jnp.sum(onehot * ff, axis=1, keepdims=True) / denom,
                          cf)                                  # empty: keep centroid
                for cf, ff in zip(cent, feats))

        cent = lax.fori_loop(0, n_iters, lloyd_body, cent0)    # rolled epilogue loop
        assign_ref[...] = assign_from(cent)


# ----------------------------------------------------------------------------
# Wrapper (forward pass of HardClusterAssigner when not fitted / if_update)
# ----------------------------------------------------------------------------
def _pick_seq_chunk(B, S, C, itemsize, target_bytes=8 << 20):
    """Largest sublane-aligned seq chunk whose (B, Sc, C) block stays under
    ~target_bytes; small sequences fall back to a single full-S block."""
    sub = 8 if itemsize >= 4 else (16 if itemsize == 2 else 32)
    row_bytes = max(B * C * itemsize, 1)
    max_rows = (target_bytes // row_bytes) // sub * sub
    if S <= sub or max_rows >= S:
        return S
    return int(max(max_rows, sub))


def hard_cluster_assigner_forward(x, num_clusters, n_iters=20, seq_chunk=None):
    """x: (B, S, n_vars) -> cluster assignments (n_vars,) int32."""
    x = jnp.asarray(x)
    if not jnp.issubdtype(x.dtype, jnp.floating):
        x = x.astype(jnp.float32)                    # stream native float dtype
    B, S, C = x.shape
    if S < 2:
        raise ValueError("need seq_len >= 2 for the |diff| feature")
    if not (1 <= num_clusters <= C):
        raise ValueError("need 1 <= num_clusters <= n_vars")

    itemsize = x.dtype.itemsize
    sub = 8 if itemsize >= 4 else (16 if itemsize == 2 else 32)
    Sc = _pick_seq_chunk(B, S, C, itemsize) if seq_chunk is None else int(seq_chunk)
    if Sc != S and Sc % sub != 0:
        raise ValueError(f"seq_chunk {Sc} must be a multiple of {sub} or the full seq_len")
    n_steps = pl.cdiv(S, Sc)                         # masked tail handles remainder

    kernel = functools.partial(
        _fused_kernel, seq_len=S, num_clusters=num_clusters, n_iters=n_iters,
        n_rows=B * S, n_diff_rows=B * (S - 1))

    cost = pl.CostEstimate(
        flops=10 * B * S * C + 40 * n_iters * num_clusters * C,
        transcendentals=C,
        bytes_accessed=B * S * C * itemsize + C * 4)

    assign = pl.pallas_call(
        kernel,
        out_shape=jax.ShapeDtypeStruct((1, C), jnp.int32),
        grid_spec=pltpu.PrefetchScalarGridSpec(
            num_scalar_prefetch=0,
            grid=(n_steps,),
            in_specs=[pl.BlockSpec((B, Sc, C), lambda s: (0, s, 0))],
            out_specs=pl.BlockSpec((1, C), lambda s: (0, 0)),
            scratch_shapes=[pltpu.VMEM((1, C), jnp.float32),    # sum(x - x0)
                            pltpu.VMEM((1, C), jnp.float32),    # sum((x - x0)^2)
                            pltpu.VMEM((1, C), jnp.float32),    # sum |diff|
                            pltpu.VMEM((1, C), jnp.float32),    # x0 shift
                            pltpu.VMEM((B, C), jnp.float32)]),  # seq-boundary carry
        compiler_params=pltpu.CompilerParams(
            dimension_semantics=("arbitrary",),      # sequential reduction over chunks
            vmem_limit_bytes=48 * 1024 * 1024),      # v7x-safe (64 MiB physical)
        cost_estimate=cost,
    )(x)

    return assign[0, :]


# ----------------------------------------------------------------------------
# Pure-numpy reference (same deterministic init + Lloyd) for a correctness check.
# ----------------------------------------------------------------------------
def _reference_assignments(x, num_clusters, n_iters):
    xn = np.asarray(x, dtype=np.float64)
    mean = xn.mean(axis=(0, 1))
    std = xn.std(axis=(0, 1))                                   # ddof=0, like np.std
    mad = np.abs(np.diff(xn, axis=1)).mean(axis=(0, 1))
    feats = np.stack([mean, std, mad], axis=1)                  # (C, 3)
    cent = feats[:num_clusters].copy()
    for _ in range(n_iters):
        d = ((feats[None, :, :] - cent[:, None, :]) ** 2).sum(-1)   # (K, C)
        a = d.argmin(axis=0)
        for k in range(num_clusters):
            m = a == k
            if m.any():
                cent[k] = feats[m].mean(axis=0)
    d = ((feats[None, :, :] - cent[:, None, :]) ** 2).sum(-1)
    return d.argmin(axis=0)


if __name__ == "__main__":
    key = jax.random.PRNGKey(0)
    B, S, n_vars = 4, 20, 8
    num_clusters = 3

    # Deterministic synthetic input: noise + per-variable offsets so the
    # per-channel features form well-separated clusters.
    noise = jax.random.normal(key, (B, S, n_vars), dtype=jnp.float32)
    offsets = (jnp.arange(n_vars) % num_clusters).astype(jnp.float32)
    x = noise * (1.0 + 0.5 * offsets)[None, None, :] + 3.0 * offsets[None, None, :]

    # seq_chunk=8 with S=20 -> cdiv grid of 3 steps, including a masked 4-row
    # tail block, exercising the streamed/tiled + tail-masking path.
    assignments = hard_cluster_assigner_forward(x, num_clusters, seq_chunk=8)
    assignments = jax.block_until_ready(assignments)

    assert assignments.shape == (n_vars,)
    assert assignments.dtype == jnp.int32
    assert int(jnp.max(assignments)) < num_clusters
    assert int(jnp.min(assignments)) >= 0

    ref = _reference_assignments(np.asarray(x), num_clusters, n_iters=20)
    assert np.array_equal(np.asarray(assignments), ref.astype(np.int32)), (
        np.asarray(assignments), ref)

    print("KERNEL_OK")
</pallas_src>

<mosaic_0001>
module attributes {stable_mosaic.version = 11 : i64} {
  func.func @_fused_kernel(%arg0: i32, %arg1: memref<4x8x8xf32, #tpu.memory_space<vmem>>, %arg2: memref<1x8xi32, #tpu.memory_space<vmem>>, %arg3: memref<1x8xf32, #tpu.memory_space<vmem>>, %arg4: memref<1x8xf32, #tpu.memory_space<vmem>>, %arg5: memref<1x8xf32, #tpu.memory_space<vmem>>, %arg6: memref<1x8xf32, #tpu.memory_space<vmem>>, %arg7: memref<4x8xf32, #tpu.memory_space<vmem>>) attributes {dimension_semantics = [#tpu.dimension_semantics<arbitrary>], iteration_bounds = array<i64: 3>, scalar_prefetch = 0 : i64, scratch_operands = 5 : i64, tpu.core_type = #tpu.core_type<tc>, window_params = [{transform_indices = @transform_0, window_bounds = array<i64: 4, 8, 8>}, {pipeline_mode = #tpu.pipeline_mode<synchronous>, transform_indices = @transform_1, window_bounds = array<i64: 1, 8>}]} {
    %c0 = arith.constant 0 : index
    %c0_0 = arith.constant 0 : index
    %c0_1 = arith.constant 0 : index
    %0 = vector.load %arg1[%c0, %c0_0, %c0_1] : memref<4x8x8xf32, #tpu.memory_space<vmem>>, vector<4x8x8xf32>
    %c0_i32 = arith.constant 0 : i32
    %1 = arith.cmpi eq, %arg0, %c0_i32 : i32
    %2 = arith.extui %1 : i1 to i32
    %c0_i32_2 = arith.constant 0 : i32
    %3 = arith.cmpi ne, %2, %c0_i32_2 : i32
    scf.if %3 {
      %cst_29 = arith.constant 0.000000e+00 : f32
      %55 = vector.broadcast %cst_29 : f32 to vector<1x8xf32>
      %c0_30 = arith.constant 0 : index
      %c0_31 = arith.constant 0 : index
      %56 = vector.load %arg3[%c0_30, %c0_31] : memref<1x8xf32, #tpu.memory_space<vmem>>, vector<1x8xf32>
      tpu.vector_store %arg3[%c0_30, %c0_31], %55 {strides = array<i32>} : memref<1x8xf32, #tpu.memory_space<vmem>>, vector<1x8xf32>,
      %cst_32 = arith.constant 0.000000e+00 : f32
      %57 = vector.broadcast %cst_32 : f32 to vector<1x8xf32>
      %c0_33 = arith.constant 0 : index
      %c0_34 = arith.constant 0 : index
      %58 = vector.load %arg4[%c0_33, %c0_34] : memref<1x8xf32, #tpu.memory_space<vmem>>, vector<1x8xf32>
      tpu.vector_store %arg4[%c0_33, %c0_34], %57 {strides = array<i32>} : memref<1x8xf32, #tpu.memory_space<vmem>>, vector<1x8xf32>,
      %cst_35 = arith.constant 0.000000e+00 : f32
      %59 = vector.broadcast %cst_35 : f32 to vector<1x8xf32>
      %c0_36 = arith.constant 0 : index
      %c0_37 = arith.constant 0 : index
      %60 = vector.load %arg5[%c0_36, %c0_37] : memref<1x8xf32, #tpu.memory_space<vmem>>, vector<1x8xf32>
      tpu.vector_store %arg5[%c0_36, %c0_37], %59 {strides = array<i32>} : memref<1x8xf32, #tpu.memory_space<vmem>>, vector<1x8xf32>,
      %61 = vector.extract_strided_slice %0 {offsets = [0, 0, 0], sizes = [1, 1, 8], strides = [1, 1, 1]} : vector<4x8x8xf32> to vector<1x1x8xf32>
      %62 = vector.shape_cast %61 : vector<1x1x8xf32> to vector<1x8xf32>
      %c0_38 = arith.constant 0 : index
      %c0_39 = arith.constant 0 : index
      %63 = vector.load %arg6[%c0_38, %c0_39] : memref<1x8xf32, #tpu.memory_space<vmem>>, vector<1x8xf32>
      tpu.vector_store %arg6[%c0_38, %c0_39], %62 {strides = array<i32>} : memref<1x8xf32, #tpu.memory_space<vmem>>, vector<1x8xf32>,
      %64 = vector.extract_strided_slice %0 {offsets = [0, 0, 0], sizes = [4, 1, 8], strides = [1, 1, 1]} : vector<4x8x8xf32> to vector<4x1x8xf32>
      %65 = vector.shape_cast %64 : vector<4x1x8xf32> to vector<4x8xf32>
      %c0_40 = arith.constant 0 : index
      %c0_41 = arith.constant 0 : index
      %66 = vector.load %arg7[%c0_40, %c0_41] : memref<4x8xf32, #tpu.memory_space<vmem>>, vector<4x8xf32>
      tpu.vector_store %arg7[%c0_40, %c0_41], %65 {strides = array<i32>} : memref<4x8xf32, #tpu.memory_space<vmem>>, vector<4x8xf32>,
    } else {
    }
    %c8_i32 = arith.constant 8 : i32
    %4 = arith.muli %arg0, %c8_i32 : i32
    %c20_i32 = arith.constant 20 : i32
    %5 = arith.subi %c20_i32, %4 : i32
    %c8_i32_3 = arith.constant 8 : i32
    %6 = arith.minsi %5, %c8_i32_3 : i32
    %7 = tpu.iota {dimensions = array<i32: 1>} : vector<4x8x8xi32>
    %8 = vector.broadcast %6 : i32 to vector<4x8x8xi32>
    %9 = arith.cmpi slt, %7, %8 : vector<4x8x8xi32>
    %c0_4 = arith.constant 0 : index
    %c0_5 = arith.constant 0 : index
    %10 = vector.load %arg6[%c0_4, %c0_5] : memref<1x8xf32, #tpu.memory_space<vmem>>, vector<1x8xf32>
    %11 = vector.shape_cast %10 : vector<1x8xf32> to vector<1x1x8xf32>
    %12 = vector.broadcast %11 : vector<1x1x8xf32> to vector<4x8x8xf32>
    %13 = arith.subf %0, %12 : vector<4x8x8xf32>
    %cst = arith.constant 0.000000e+00 : f32
    %14 = vector.broadcast %cst : f32 to vector<4x8x8xf32>
    %15 = arith.select %9, %13, %14 : vector<4x8x8xi1>, vector<4x8x8xf32>
    %c0_6 = arith.constant 0 : index
    %c0_7 = arith.constant 0 : index
    %16 = vector.load %arg3[%c0_6, %c0_7] : memref<1x8xf32, #tpu.memory_space<vmem>>, vector<1x8xf32>
    %cst_8 = arith.constant dense<0.000000e+00> : vector<8xf32>
    %17 = vector.multi_reduction <add>, %15, %cst_8 [0, 1] : vector<4x8x8xf32> to vector<8xf32>
    %18 = vector.shape_cast %17 : vector<8xf32> to vector<1x8xf32>
    %19 = arith.addf %16, %18 : vector<1x8xf32>
    %c0_9 = arith.constant 0 : index
    %c0_10 = arith.constant 0 : index
    %20 = vector.load %arg3[%c0_9, %c0_10] : memref<1x8xf32, #tpu.memory_space<vmem>>, vector<1x8xf32>
    tpu.vector_store %arg3[%c0_9, %c0_10], %19 {strides = array<i32>} : memref<1x8xf32, #tpu.memory_space<vmem>>, vector<1x8xf32>,
    %c0_11 = arith.constant 0 : index
    %c0_12 = arith.constant 0 : index
    %21 = vector.load %arg4[%c0_11, %c0_12] : memref<1x8xf32, #tpu.memory_space<vmem>>, vector<1x8xf32>
    %22 = arith.mulf %15, %15 : vector<4x8x8xf32>
    %cst_13 = arith.constant dense<0.000000e+00> : vector<8xf32>
    %23 = vector.multi_reduction <add>, %22, %cst_13 [0, 1] : vector<4x8x8xf32> to vector<8xf32>
    %24 = vector.shape_cast %23 : vector<8xf32> to vector<1x8xf32>
    %25 = arith.addf %21, %24 : vector<1x8xf32>
    %c0_14 = arith.constant 0 : index
    %c0_15 = arith.constant 0 : index
    %26 = vector.load %arg4[%c0_14, %c0_15] : memref<1x8xf32, #tpu.memory_space<vmem>>, vector<1x8xf32>
    tpu.vector_store %arg4[%c0_14, %c0_15], %25 {strides = array<i32>} : memref<1x8xf32, #tpu.memory_space<vmem>>, vector<1x8xf32>,
    %27 = vector.shape_cast %0 : vector<4x8x8xf32> to vector<32x8xf32>
    %c1_i32 = arith.constant 1 : i32
    %28 = tpu.dynamic_rotate %27 by %c1_i32 dim 0 : vector<32x8xf32>, i32 -> vector<32x8xf32>
    %29 = vector.shape_cast %28 : vector<32x8xf32> to vector<4x8x8xf32>
    %c1_i32_16 = arith.constant 1 : i32
    %30 = vector.broadcast %c1_i32_16 : i32 to vector<4x8x8xi32>
    %31 = arith.cmpi sge, %7, %30 : vector<4x8x8xi32>
    %32 = arith.andi %31, %9 : vector<4x8x8xi1>
    %33 = arith.subf %0, %29 : vector<4x8x8xf32>
    %34 = math.absf %33 : vector<4x8x8xf32>
    %cst_17 = arith.constant 0.000000e+00 : f32
    %35 = vector.broadcast %cst_17 : f32 to vector<4x8x8xf32>
    %36 = arith.select %32, %34, %35 : vector<4x8x8xi1>, vector<4x8x8xf32>
    %cst_18 = arith.constant dense<0.000000e+00> : vector<8xf32>
    %37 = vector.multi_reduction <add>, %36, %cst_18 [0, 1] : vector<4x8x8xf32> to vector<8xf32>
    %38 = vector.extract_strided_slice %0 {offsets = [0, 0, 0], sizes = [4, 1, 8], strides = [1, 1, 1]} : vector<4x8x8xf32> to vector<4x1x8xf32>
    %39 = vector.shape_cast %38 : vector<4x1x8xf32> to vector<4x8xf32>
    %c0_19 = arith.constant 0 : index
    %c0_20 = arith.constant 0 : index
    %40 = vector.load %arg7[%c0_19, %c0_20] : memref<4x8xf32, #tpu.memory_space<vmem>>, vector<4x8xf32>
    %41 = arith.subf %39, %40 : vector<4x8xf32>
    %42 = math.absf %41 : vector<4x8xf32>
    %c0_21 = arith.constant 0 : index
    %c0_22 = arith.constant 0 : index
    %43 = vector.load %arg5[%c0_21, %c0_22] : memref<1x8xf32, #tpu.memory_space<vmem>>, vector<1x8xf32>
    %cst_23 = arith.constant dense<0.000000e+00> : vector<8xf32>
    %44 = vector.multi_reduction <add>, %42, %cst_23 [0] : vector<4x8xf32> to vector<8xf32>
    %45 = arith.addf %37, %44 : vector<8xf32>
    %46 = vector.shape_cast %45 : vector<8xf32> to vector<1x8xf32>
    %47 = arith.addf %43, %46 : vector<1x8xf32>
    %c0_24 = arith.constant 0 : index
    %c0_25 = arith.constant 0 : index
    %48 = vector.load %arg5[%c0_24, %c0_25] : memref<1x8xf32, #tpu.memory_space<vmem>>, vector<1x8xf32>
    tpu.vector_store %arg5[%c0_24, %c0_25], %47 {strides = array<i32>} : memref<1x8xf32, #tpu.memory_space<vmem>>, vector<1x8xf32>,
    %49 = vector.extract_strided_slice %0 {offsets = [0, 7, 0], sizes = [4, 1, 8], strides = [1, 1, 1]} : vector<4x8x8xf32> to vector<4x1x8xf32>
    %50 = vector.shape_cast %49 : vector<4x1x8xf32> to vector<4x8xf32>
    %c0_26 = arith.constant 0 : index
    %c0_27 = arith.constant 0 : index
    %51 = vector.load %arg7[%c0_26, %c0_27] : memref<4x8xf32, #tpu.memory_space<vmem>>, vector<4x8xf32>
    tpu.vector_store %arg7[%c0_26, %c0_27], %50 {strides = array<i32>} : memref<4x8xf32, #tpu.memory_space<vmem>>, vector<4x8xf32>,
    %c2_i32 = arith.constant 2 : i32
    %52 = arith.cmpi eq, %arg0, %c2_i32 : i32
    %53 = arith.extui %52 : i1 to i32
    %c0_i32_28 = arith.constant 0 : i32
    %54 = arith.cmpi ne, %53, %c0_i32_28 : i32
    scf.if %54 {
      %c0_29 = arith.constant 0 : index
      %c0_30 = arith.constant 0 : index
      %55 = vector.load %arg3[%c0_29, %c0_30] : memref<1x8xf32, #tpu.memory_space<vmem>>, vector<1x8xf32>
      %cst_31 = arith.constant 1.250000e-02 : f32
      %56 = vector.broadcast %cst_31 : f32 to vector<1x8xf32>
      %57 = arith.mulf %55, %56 : vector<1x8xf32>
      %c0_32 = arith.constant 0 : index
      %c0_33 = arith.constant 0 : index
      %58 = vector.load %arg6[%c0_32, %c0_33] : memref<1x8xf32, #tpu.memory_space<vmem>>, vector<1x8xf32>
      %59 = arith.addf %58, %57 : vector<1x8xf32>
      %c0_34 = arith.constant 0 : index
      %c0_35 = arith.constant 0 : index
      %60 = vector.load %arg4[%c0_34, %c0_35] : memref<1x8xf32, #tpu.memory_space<vmem>>, vector<1x8xf32>
      %cst_36 = arith.constant 1.250000e-02 : f32
      %61 = vector.broadcast %cst_36 : f32 to vector<1x8xf32>
      %62 = arith.mulf %60, %61 : vector<1x8xf32>
      %63 = arith.mulf %57, %57 : vector<1x8xf32>
      %64 = arith.subf %62, %63 : vector<1x8xf32>
      %cst_37 = arith.constant 0.000000e+00 : f32
      %65 = vector.broadcast %cst_37 : f32 to vector<1x8xf32>
      %66 = arith.maximumf %64, %65 : vector<1x8xf32>
      %67 = math.sqrt %66 : vector<1x8xf32>
      %c0_38 = arith.constant 0 : index
      %c0_39 = arith.constant 0 : index
      %68 = vector.load %arg5[%c0_38, %c0_39] : memref<1x8xf32, #tpu.memory_space<vmem>>, vector<1x8xf32>
      %cst_40 = arith.constant 0.0131578948 : f32
      %69 = vector.broadcast %cst_40 : f32 to vector<1x8xf32>
      %70 = arith.mulf %68, %69 : vector<1x8xf32>
      %71 = tpu.iota {dimensions = array<i32: 0>} : vector<3x8xi32>
      %72 = tpu.iota {dimensions = array<i32: 1>} : vector<3x8xi32>
      %73 = arith.cmpi eq, %72, %71 : vector<3x8xi32>
      %74 = arith.extui %73 : vector<3x8xi1> to vector<3x8xi32>
      %75 = arith.sitofp %74 : vector<3x8xi32> to vector<3x8xf32>
      %76 = vector.broadcast %59 : vector<1x8xf32> to vector<3x8xf32>
      %77 = arith.mulf %75, %76 : vector<3x8xf32>
      %cst_41 = arith.constant dense<0.000000e+00> : vector<3xf32>
      %78 = vector.multi_reduction <add>, %77, %cst_41 [1] : vector<3x8xf32> to vector<3xf32>
      %79 = vector.shape_cast %78 : vector<3xf32> to vector<3x1xf32>
      %80 = vector.broadcast %67 : vector<1x8xf32> to vector<3x8xf32>
      %81 = arith.mulf %75, %80 : vector<3x8xf32>
      %cst_42 = arith.constant dense<0.000000e+00> : vector<3xf32>
      %82 = vector.multi_reduction <add>, %81, %cst_42 [1] : vector<3x8xf32> to vector<3xf32>
      %83 = vector.shape_cast %82 : vector<3xf32> to vector<3x1xf32>
      %84 = vector.broadcast %70 : vector<1x8xf32> to vector<3x8xf32>
      %85 = arith.mulf %75, %84 : vector<3x8xf32>
      %cst_43 = arith.constant dense<0.000000e+00> : vector<3xf32>
      %86 = vector.multi_reduction <add>, %85, %cst_43 [1] : vector<3x8xf32> to vector<3xf32>
      %87 = vector.shape_cast %86 : vector<3xf32> to vector<3x1xf32>
      %c0_i32_44 = arith.constant 0 : i32
      %c20_i32_45 = arith.constant 20 : i32
      %88 = arith.addi %c0_i32_44, %c20_i32_45 : i32
      %c1_i32_46 = arith.constant 1 : i32
      %89:3 = scf.for %arg8 = %c0_i32_44 to %88 step %c1_i32_46 iter_args(%arg9 = %79, %arg10 = %83, %arg11 = %87) -> (vector<3x1xf32>, vector<3x1xf32>, vector<3x1xf32>)  : i32 {
        %cst_52 = arith.constant 0.000000e+00 : f32
        %115 = vector.broadcast %cst_52 : f32 to vector<3x8xf32>
        %116 = vector.broadcast %arg9 : vector<3x1xf32> to vector<3x8xf32>
        %117 = vector.broadcast %59 : vector<1x8xf32> to vector<3x8xf32>
        %118 = arith.subf %116, %117 : vector<3x8xf32>
        %119 = arith.mulf %118, %118 : vector<3x8xf32>
        %120 = arith.addf %115, %119 : vector<3x8xf32>
        %121 = vector.broadcast %arg10 : vector<3x1xf32> to vector<3x8xf32>
        %122 = vector.broadcast %67 : vector<1x8xf32> to vector<3x8xf32>
        %123 = arith.subf %121, %122 : vector<3x8xf32>
        %124 = arith.mulf %123, %123 : vector<3x8xf32>
        %125 = arith.addf %120, %124 : vector<3x8xf32>
        %126 = vector.broadcast %arg11 : vector<3x1xf32> to vector<3x8xf32>
        %127 = vector.broadcast %70 : vector<1x8xf32> to vector<3x8xf32>
        %128 = arith.subf %126, %127 : vector<3x8xf32>
        %129 = arith.mulf %128, %128 : vector<3x8xf32>
        %130 = arith.addf %125, %129 : vector<3x8xf32>
        %cst_53 = arith.constant dense<0x7F800000> : vector<8xf32>
        %131 = vector.multi_reduction <minimumf>, %130, %cst_53 [0] : vector<3x8xf32> to vector<8xf32>
        %132 = vector.shape_cast %131 : vector<8xf32> to vector<1x8xf32>
        %133 = vector.broadcast %132 : vector<1x8xf32> to vector<3x8xf32>
        %134 = arith.cmpf ole, %130, %133 : vector<3x8xf32>
        %c3_i32_54 = arith.constant 3 : i32
        %135 = vector.broadcast %c3_i32_54 : i32 to vector<3x8xi32>
        %136 = arith.select %134, %71, %135 : vector<3x8xi1>, vector<3x8xi32>
        %cst_55 = arith.constant dense<2147483647> : vector<8xi32>
        %137 = vector.multi_reduction <minsi>, %136, %cst_55 [0] : vector<3x8xi32> to vector<8xi32>
        %138 = vector.shape_cast %137 : vector<8xi32> to vector<1x8xi32>
        %139 = vector.broadcast %138 : vector<1x8xi32> to vector<3x8xi32>
        %140 = arith.cmpi eq, %139, %71 : vector<3x8xi32>
        %141 = arith.extui %140 : vector<3x8xi1> to vector<3x8xi32>
        %142 = arith.sitofp %141 : vector<3x8xi32> to vector<3x8xf32>
        %cst_56 = arith.constant dense<0.000000e+00> : vector<3xf32>
        %143 = vector.multi_reduction <add>, %142, %cst_56 [1] : vector<3x8xf32> to vector<3xf32>
        %144 = vector.shape_cast %143 : vector<3xf32> to vector<3x1xf32>
        %cst_57 = arith.constant 1.000000e+00 : f32
        %145 = vector.broadcast %cst_57 : f32 to vector<3x1xf32>
        %146 = arith.maximumf %144, %145 : vector<3x1xf32>
        %cst_58 = arith.constant 0.000000e+00 : f32
        %147 = vector.broadcast %cst_58 : f32 to vector<3x1xf32>
        %148 = arith.cmpf ogt, %144, %147 : vector<3x1xf32>
        %149 = vector.broadcast %59 : vector<1x8xf32> to vector<3x8xf32>
        %150 = arith.mulf %142, %149 : vector<3x8xf32>
        %cst_59 = arith.constant dense<0.000000e+00> : vector<3xf32>
        %151 = vector.multi_reduction <add>, %150, %cst_59 [1] : vector<3x8xf32> to vector<3xf32>
        %152 = vector.shape_cast %151 : vector<3xf32> to vector<3x1xf32>
        %153 = arith.divf %152, %146 : vector<3x1xf32>
        %154 = arith.select %148, %153, %arg9 : vector<3x1xi1>, vector<3x1xf32>
        %cst_60 = arith.constant 0.000000e+00 : f32
        %155 = vector.broadcast %cst_60 : f32 to vector<3x1xf32>
        %156 = arith.cmpf ogt, %144, %155 : vector<3x1xf32>
        %157 = vector.broadcast %67 : vector<1x8xf32> to vector<3x8xf32>
        %158 = arith.mulf %142, %157 : vector<3x8xf32>
        %cst_61 = arith.constant dense<0.000000e+00> : vector<3xf32>
        %159 = vector.multi_reduction <add>, %158, %cst_61 [1] : vector<3x8xf32> to vector<3xf32>
        %160 = vector.shape_cast %159 : vector<3xf32> to vector<3x1xf32>
        %161 = arith.divf %160, %146 : vector<3x1xf32>
        %162 = arith.select %156, %161, %arg10 : vector<3x1xi1>, vector<3x1xf32>
        %cst_62 = arith.constant 0.000000e+00 : f32
        %163 = vector.broadcast %cst_62 : f32 to vector<3x1xf32>
        %164 = arith.cmpf ogt, %144, %163 : vector<3x1xf32>
        %165 = vector.broadcast %70 : vector<1x8xf32> to vector<3x8xf32>
        %166 = arith.mulf %142, %165 : vector<3x8xf32>
        %cst_63 = arith.constant dense<0.000000e+00> : vector<3xf32>
        %167 = vector.multi_reduction <add>, %166, %cst_63 [1] : vector<3x8xf32> to vector<3xf32>
        %168 = vector.shape_cast %167 : vector<3xf32> to vector<3x1xf32>
        %169 = arith.divf %168, %146 : vector<3x1xf32>
        %170 = arith.select %164, %169, %arg11 : vector<3x1xi1>, vector<3x1xf32>
        scf.yield %154, %162, %170 : vector<3x1xf32>, vector<3x1xf32>, vector<3x1xf32>
      }
      %cst_47 = arith.constant 0.000000e+00 : f32
      %90 = vector.broadcast %cst_47 : f32 to vector<3x8xf32>
      %91 = vector.broadcast %89#0 : vector<3x1xf32> to vector<3x8xf32>
      %92 = vector.broadcast %59 : vector<1x8xf32> to vector<3x8xf32>
      %93 = arith.subf %91, %92 : vector<3x8xf32>
      %94 = arith.mulf %93, %93 : vector<3x8xf32>
      %95 = arith.addf %90, %94 : vector<3x8xf32>
      %96 = vector.broadcast %89#1 : vector<3x1xf32> to vector<3x8xf32>
      %97 = vector.broadcast %67 : vector<1x8xf32> to vector<3x8xf32>
      %98 = arith.subf %96, %97 : vector<3x8xf32>
      %99 = arith.mulf %98, %98 : vector<3x8xf32>
      %100 = arith.addf %95, %99 : vector<3x8xf32>
      %101 = vector.broadcast %89#2 : vector<3x1xf32> to vector<3x8xf32>
      %102 = vector.broadcast %70 : vector<1x8xf32> to vector<3x8xf32>
      %103 = arith.subf %101, %102 : vector<3x8xf32>
      %104 = arith.mulf %103, %103 : vector<3x8xf32>
      %105 = arith.addf %100, %104 : vector<3x8xf32>
      %cst_48 = arith.constant dense<0x7F800000> : vector<8xf32>
      %106 = vector.multi_reduction <minimumf>, %105, %cst_48 [0] : vector<3x8xf32> to vector<8xf32>
      %107 = vector.shape_cast %106 : vector<8xf32> to vector<1x8xf32>
      %108 = vector.broadcast %107 : vector<1x8xf32> to vector<3x8xf32>
      %109 = arith.cmpf ole, %105, %108 : vector<3x8xf32>
      %c3_i32 = arith.constant 3 : i32
      %110 = vector.broadcast %c3_i32 : i32 to vector<3x8xi32>
      %111 = arith.select %109, %71, %110 : vector<3x8xi1>, vector<3x8xi32>
      %cst_49 = arith.constant dense<2147483647> : vector<8xi32>
      %112 = vector.multi_reduction <minsi>, %111, %cst_49 [0] : vector<3x8xi32> to vector<8xi32>
      %113 = vector.shape_cast %112 : vector<8xi32> to vector<1x8xi32>
      %c0_50 = arith.constant 0 : index
      %c0_51 = arith.constant 0 : index
      %114 = vector.load %arg2[%c0_50, %c0_51] : memref<1x8xi32, #tpu.memory_space<vmem>>, vector<1x8xi32>
      tpu.vector_store %arg2[%c0_50, %c0_51], %113 {strides = array<i32>} : memref<1x8xi32, #tpu.memory_space<vmem>>, vector<1x8xi32>,
    } else {
    }
    return
  }
  func.func @transform_0(%arg0: i32) -> (i32, i32, i32) {
    %c0_i32 = arith.constant 0 : i32
    %c0_i32_0 = arith.constant 0 : i32
    %c0_i32_1 = arith.constant 0 : i32
    return %c0_i32, %arg0, %c0_i32_0 : i32, i32, i32
  }
  func.func @transform_1(%arg0: i32) -> (i32, i32) {
    %c0_i32 = arith.constant 0 : i32
    %c0_i32_0 = arith.constant 0 : i32
    %c0_i32_1 = arith.constant 0 : i32
    return %c0_i32, %c0_i32_0 : i32, i32
  }
}

</mosaic_0001>

<llo_original>
// kernel: tpu_custom_call.1
$region0: #{tpu_custom_call.1}
  #allocation0 [shape = 'u32[]', space=smem, size = 0x4, offset = 0x4, fixed_abs, tag = 'smem constant byte address 0x4 - core index']
  #allocation1 [shape = 'u32[144,128]{1,0:T(1,128)}', space=vmem, size = 0x12000, scoped, tag = 'internal scratch']
  #allocation2 [shape = 'f32[1,8]{1,0:T(1,128)}', space=vmem, size = 0x200, scoped, tag = 'scratch operand']
  #allocation3 [shape = 'f32[1,8]{1,0:T(1,128)}', space=vmem, size = 0x200, scoped, tag = 'scratch operand']
  #allocation4 [shape = 'f32[1,8]{1,0:T(1,128)}', space=vmem, size = 0x200, scoped, tag = 'scratch operand']
  #allocation5 [shape = 'f32[1,8]{1,0:T(1,128)}', space=vmem, size = 0x200, scoped, tag = 'scratch operand']
  #allocation6 [shape = 'f32[4,8]{1,0:T(4,128)}', space=vmem, size = 0x800, scoped, tag = 'scratch operand']
  %s0 = inlined_call_operand.vmem [shape: f32[4,20,8], index: 0, kind: input, shape index: {}]
  %s1 = inlined_call_operand.hbm [shape: s32[1,8], index: 1, kind: output, shape index: {}]
  %s2 = sld [smem:[#allocation0]]
  $region90: #{tpu_custom_call.1} parent=0
    _
  %s4 = ssub.s32 1, %s2
  %s5 = scalar_select 0, %s4, %s2
  $region1: #{tpu_custom_call.1} parent=0
    #allocation7 [shape = 'u8[32768]{0}', space=vmem, size = 0x8000, scoped, tag = 'input window, operand 0']
    #allocation8 [shape = 'u8[512]{0}', space=vmem, size = 0x400, scoped, tag = 'output window, operand 0, single buffered']
    #allocation9 [shape = 's32[2]{0}', space=sflag, size = 0x8, scoped, tag = 'scoped memory for tpu_custom_call.1']
    %6 = vsyncpa [#allocation9], 0
    loop: start=0, step=1, limit=5
    $region2: #{tpu_custom_call.1} parent=1 // loop_pre_header
      _
    $region3: #{tpu_custom_call.1} parent=1 // loop_header
      %s8 = sphi 0, %s12
      %p9 = scmp.ge.s32.totalorder %s8, 5
      %s18 = sphi 0, %s20
      %s21 = sphi 0, %s18
      %s22 = sphi 0, %s21
      %s38 = sphi 0, %s22
      %s42 = sphi 0, %s42
      %s44 = sphi 0, %s42
      %s45 = sphi 0, %s44
      %s59 = sphi 0, %s45
    $region4: #{tpu_custom_call.1} parent=1 // loop_header_branch
      %11 = sbr.rel (%p9) target = $region8
    $region5: #{tpu_custom_call.1} parent=1 // loop_body
      %s13 = ssub.s32 %s8, 1
      %s14 = ssub.s32 %s8, 2
      %s15 = sadd.s32 %s8, 1
      %s16 = ssub.s32 %s8, %s15
      %p17 = scmp.eq.s32.totalorder %s16, 0
      %s19 = sadd.s32 %s18, 1
      %s20 = scalar_select %p17, %s18, %s19
      %p23 = pneg %p17
      %p24 = scmp.eq.s32.totalorder %s8, 2
      %p25 = por %p23, %p24
      %p26 = scmp.ne.s32.totalorder %s18, %s21
      %p27 = scmp.eq.s32.totalorder %s8, 0
      %p28 = por %p26, %p27
      %p29 = scmp.ne.s32.totalorder %s18, %s21
      %p30 = scmp.eq.s32.totalorder %s13, 2
      %p31 = por %p29, %p30
      %p32 = scmp.ne.s32.totalorder %s21, %s22
      %p33 = scmp.eq.s32.totalorder %s13, 0
      %p34 = por %p32, %p33
      %p35 = scmp.ne.s32.totalorder %s21, %s22
      %p36 = scmp.eq.s32.totalorder %s14, 2
      %p37 = por %p35, %p36
      %p39 = scmp.ne.s32.totalorder %s22, %s38
      %p40 = scmp.eq.s32.totalorder %s14, 0
      %p41 = por %p39, %p40
      %s43 = sadd.s32 %s42, 1
      %p46 = scmp.eq.s32.totalorder %s8, 2
      %p47 = scmp.ne.s32.totalorder %s42, %s44
      %p48 = scmp.eq.s32.totalorder %s8, 0
      %p49 = por %p47, %p48
      %p50 = scmp.ne.s32.totalorder %s42, %s44
      %p51 = scmp.eq.s32.totalorder %s13, 2
      %p52 = por %p50, %p51
      %p53 = scmp.ne.s32.totalorder %s44, %s45
      %p54 = scmp.eq.s32.totalorder %s13, 0
      %p55 = por %p53, %p54
      %p56 = scmp.ne.s32.totalorder %s44, %s45
      %p57 = scmp.eq.s32.totalorder %s14, 2
      %p58 = por %p56, %p57
      %p60 = scmp.ne.s32.totalorder %s45, %s59
      %p61 = scmp.eq.s32.totalorder %s14, 0
      %p62 = por %p60, %p61
      %p63 = scmp.le.s32.totalorder 1, %s8
      %p64 = scmp.lt.s32.totalorder %s8, 4
      %p65 = pnand %p63, %p64
      %p66 = pneg %p65
      // Predicated region
      $region9: #{tpu_custom_call.1} parent=5 // pred_check
        _
      $region10: #{tpu_custom_call.1} parent=5 // pred_check_branch
        %68 = sbr.rel (%p65) target = $region12
      $region11: #{tpu_custom_call.1} parent=5 // pred_region
        %s69 = ssub.s32 %s8, 1
      $region12: #{tpu_custom_call.1} parent=5 // pred_fallthru
        _
      %p70 = scmp.lt.s32.totalorder %s8, 3
      // Predicated region
      $region13: #{tpu_custom_call.1} parent=5 // pred_check
        %p71 = pneg %p70
      $region14: #{tpu_custom_call.1} parent=5 // pred_check_branch
        %73 = sbr.rel (%p71) target = $region16
      $region15: #{tpu_custom_call.1} parent=5 // pred_region
        // Predicated region
        $region17: #{tpu_custom_call.1} parent=15 // pred_check
          %p74 = pneg %p28
        $region18: #{tpu_custom_call.1} parent=15 // pred_check_branch
          %76 = sbr.rel (%p74) target = $region20
        $region19: #{tpu_custom_call.1} parent=15 // pred_region
          %s77 = sand.u32 %s18, 1
          %s78 = sand.u32 %s18, 1
          %s79 = smul.addr %s78, 32
          %s80 = scalar_lea.vmem [#allocation7], %s79
          %s81 = smul.addr %s8, 8
          %s82 = scalar_lea.vmem %s0, %s81
          // Predicated region
          $region21: #{tpu_custom_call.1} parent=19 // pred_check
            _
          $region22: #{tpu_custom_call.1} parent=19 // pred_check_branch
            %84 = sbr.rel (0) target = $region24
          $region23: #{tpu_custom_call.1} parent=19 // pred_region
            // Predicated region
            $region25: #{tpu_custom_call.1} parent=23 // pred_check
              _
            $region26: #{tpu_custom_call.1} parent=23 // pred_check_branch
              %86 = sbr.rel (0) target = $region28
            $region27: #{tpu_custom_call.1} parent=23 // pred_region
              // Predicated region
              $region40: #{tpu_custom_call.1} parent=27 // pred_check
                _
              $region41: #{tpu_custom_call.1} parent=27 // pred_check_branch
                %107 = sbr.rel (0) target = $region43
              $region42: #{tpu_custom_call.1} parent=27 // pred_region
                loop: start=0, step=1, limit=1
                $region44: #{tpu_custom_call.1} parent=42 // loop_pre_header
                  _
                $region45: #{tpu_custom_call.1} parent=42 // loop_header
                  %s109 = sphi 0, %s113
                  %p110 = scmp.ge.s32.totalorder %s109, 1
                  %s114 = sphi %s82, %s82
                  %s115 = sphi %s80, %s80
                $region46: #{tpu_custom_call.1} parent=42 // loop_header_branch
                  %112 = sbr.rel (%p110) target = $region50
                $region47: #{tpu_custom_call.1} parent=42 // loop_body
                  %v116 = vld [vmem:[%s114] sm:$0xff]
                  %117 = vst [vmem:[%s115] sm:$0xff] %v116
                  %v118 = vld [vmem:[%s114 + $0x18] sm:$0xff]
                  %119 = vst [vmem:[%s115 + $0x8] sm:$0xff] %v118
                  %v120 = vld [vmem:[%s114 + $0x30] sm:$0xff]
                  %121 = vst [vmem:[%s115 + $0x10] sm:$0xff] %v120
                  %v122 = vld [vmem:[%s114 + $0x48] sm:$0xff]
                  %123 = vst [vmem:[%s115 + $0x18] sm:$0xff] %v122
                $region48: #{tpu_custom_call.1} parent=42 // loop_footer
                  %s113 = sadd.s32 1, %s109
                $region49: #{tpu_custom_call.1} parent=42 // loop_footer_branch
                  %108 = sbr.rel target = $region45
                $region50: #{tpu_custom_call.1} parent=42 // loop_exit
                  _
              $region43: #{tpu_custom_call.1} parent=27 // pred_fallthru
                _
              // Predicated region
              $region51: #{tpu_custom_call.1} parent=27 // pred_check
                _
              $region52: #{tpu_custom_call.1} parent=27 // pred_check_branch
                %125 = sbr.rel target = $region54
              $region53: #{tpu_custom_call.1} parent=27 // pred_region
                _
              $region54: #{tpu_custom_call.1} parent=27 // pred_fallthru
                _
            $region28: #{tpu_custom_call.1} parent=23 // pred_fallthru
              _
            // Predicated region
            $region29: #{tpu_custom_call.1} parent=23 // pred_check
              _
            $region30: #{tpu_custom_call.1} parent=23 // pred_check_branch
              %88 = sbr.rel target = $region32
            $region31: #{tpu_custom_call.1} parent=23 // pred_region
              loop: start=0, step=1, limit=1
              $region33: #{tpu_custom_call.1} parent=31 // loop_pre_header
                _
              $region34: #{tpu_custom_call.1} parent=31 // loop_header
                %s91 = sphi 0, %s95
                %p92 = scmp.ge.s32.totalorder %s91, 1
                %s96 = sphi %s82, %s82
                %s97 = sphi %s80, %s80
              $region35: #{tpu_custom_call.1} parent=31 // loop_header_branch
                %94 = sbr.rel (%p92) target = $region39
              $region36: #{tpu_custom_call.1} parent=31 // loop_body
                %v98 = vld [vmem:[%s96] sm:$0xff]
                %99 = vst [vmem:[%s97] sm:$0xff] %v98
                %v100 = vld [vmem:[%s96 + $0x18] sm:$0xff]
                %101 = vst [vmem:[%s97 + $0x8] sm:$0xff] %v100
                %v102 = vld [vmem:[%s96 + $0x30] sm:$0xff]
                %103 = vst [vmem:[%s97 + $0x10] sm:$0xff] %v102
                %v104 = vld [vmem:[%s96 + $0x48] sm:$0xff]
                %105 = vst [vmem:[%s97 + $0x18] sm:$0xff] %v104
              $region37: #{tpu_custom_call.1} parent=31 // loop_footer
                %s95 = sadd.s32 1, %s91
              $region38: #{tpu_custom_call.1} parent=31 // loop_footer_branch
                %90 = sbr.rel target = $region34
              $region39: #{tpu_custom_call.1} parent=31 // loop_exit
                _
            $region32: #{tpu_custom_call.1} parent=23 // pred_fallthru
              _
          $region24: #{tpu_custom_call.1} parent=19 // pred_fallthru
            _
          %126 = vnop
        $region20: #{tpu_custom_call.1} parent=15 // pred_fallthru
          _
      $region16: #{tpu_custom_call.1} parent=5 // pred_fallthru
        _
      %p127 = scmp.le.s32.totalorder 1, %s8
      %p128 = scmp.lt.s32.totalorder %s8, 4
      %p129 = pnand %p127, %p128
      %p130 = pneg %p129
      // Predicated region
      $region55: #{tpu_custom_call.1} parent=5 // pred_check
        _
      $region56: #{tpu_custom_call.1} parent=5 // pred_check_branch
        %132 = sbr.rel (%p129) target = $region58
      $region57: #{tpu_custom_call.1} parent=5 // pred_region
        %s133 = ssub.s32 %s8, 1
        %s134 = sand.u32 %s21, 1
        %s135 = sand.u32 %s21, 1
        %s136 = smul.addr %s135, 32
        %s137 = scalar_lea.vmem [#allocation7], %s136
        // Predicated region
        $region59: #{tpu_custom_call.1} parent=57 // pred_check
          %p138 = pneg %p34
        $region60: #{tpu_custom_call.1} parent=57 // pred_check_branch
          %140 = sbr.rel (%p138) target = $region62
        $region61: #{tpu_custom_call.1} parent=57 // pred_region
          _
        $region62: #{tpu_custom_call.1} parent=57 // pred_fallthru
          _
        %s141 = sand.u32 %s21, 1
        %s142 = sand.u32 %s21, 1
        %s143 = smul.addr %s142, 32
        %s144 = scalar_lea.vmem [#allocation7], %s143
        %p145 = pneg %p34
        %p146 = pneg %p31
        %p147 = pneg %p55
        %p148 = pneg %p52
        %v149 = vld [vmem:[%s137] sm:$0xff]
        %v150 = vld [vmem:[%s137 + $0x8] sm:$0xff]
        %v151 = vld [vmem:[%s137 + $0x10] sm:$0xff]
        %v152 = vld [vmem:[%s137 + $0x18] sm:$0xff]
        %p153 = scmp.eq.s32.totalorder %s13, 0
        // Predicated region
        $region63: #{tpu_custom_call.1} parent=57 // pred_check
          %p154 = pneg %p153
        $region64: #{tpu_custom_call.1} parent=57 // pred_check_branch
          %156 = sbr.rel (%p154) target = $region66
        $region65: #{tpu_custom_call.1} parent=57 // pred_region
          %vm157 = vcmask 57344
          %158 = vst.msk [vmem:[#allocation2] sm:$0x1] %vm157, 0.0
          %159 = vst.msk [vmem:[#allocation3] sm:$0x1] %vm157, 0.0
          %160 = vst.msk [vmem:[#allocation4] sm:$0x1] %vm157, 0.0
          %161 = vst.msk [vmem:[#allocation5] sm:$0x1] %vm157, %v149
          %v166 = vrot.slane %v150, 7
          %vm167 = vcmask 1041409
          %v168 = vsel %vm167, %v166, %v149
          %v169 = vrot.slane %v151, 6
          %vm170 = vcmask 1042434
          %v171 = vsel %vm170, %v169, %v168
          %v172 = vrot.slane %v152, 5
          %vm173 = vcmask 1043459
          %v174 = vsel %vm173, %v172, %v171
          %vm176 = vcmask 60416
          %177 = vst.msk [vmem:[#allocation6] sm:$0xf] %vm176, %v174
        $region66: #{tpu_custom_call.1} parent=57 // pred_fallthru
          _
        %s178 = smul.u32 %s13, 8
        %s179 = ssub.s32 20, %s178
        %p180 = scmp.lt.s32.totalorder %s179, 8
        %s181 = scalar_select %p180, %s179, 8
        %v182 = vlaneseq
        %v183 = vshrl.u32 %v182, 7
        %v184 = vstv %s181
        %vm185 = vcmp.lt.s32.totalorder %v183, %v184
        %v186 = vld [vmem:[#allocation5] sm:$0x1]
        %v188 = vlaneseq
        %v189 = vshrl.u32 %v188, 7
        %v190 = vsub.s32 0, %v189
        %v191 = vrot.slane %v186, %v190
        %v193 = vsub.f32 %v149, %v191
        %v194 = vsub.f32 %v150, %v191
        %v195 = vsub.f32 %v151, %v191
        %v196 = vsub.f32 %v152, %v191
        %v197 = vsel %vm185, %v193, 0.0
        %v198 = vsel %vm185, %v194, 0.0
        %v199 = vsel %vm185, %v195, 0.0
        %v200 = vsel %vm185, %v196, 0.0
        %v201 = vld [vmem:[#allocation2] sm:$0x1]
        %vm202 = vcmask 64512
        %v203 = vsel %vm202, %v197, 0.0
        %v204 = vsel %vm202, %v198, 0.0
        %v205 = vadd.f32 %v203, %v204
        %v206 = vsel %vm202, %v199, 0.0
        %v207 = vadd.f32 %v205, %v206
        %v208 = vsel %vm202, %v200, 0.0
        %v209 = vadd.f32 %v207, %v208
        %v210 = vrot.slane %v209, 4
        %v211 = vadd.f32 %v209, %v210
        %v212 = vrot.slane %v211, 2
        %v213 = vadd.f32 %v211, %v212
        %v214 = vrot.slane %v213, 1
        %v215 = vadd.f32 %v213, %v214
        %v216 = vadd.f32 %v201, %v215
        %vm217 = vcmask 57344
        %218 = vst.msk [vmem:[#allocation2] sm:$0x1] %vm217, %v216
        %v219 = vld [vmem:[#allocation3] sm:$0x1]
        %v220 = vmul.f32 %v197, %v197
        %v221 = vmul.f32 %v198, %v198
        %v222 = vmul.f32 %v199, %v199
        %v223 = vmul.f32 %v200, %v200
        %v224 = vsel %vm202, %v220, 0.0
        %v225 = vsel %vm202, %v221, 0.0
        %v226 = vadd.f32 %v224, %v225
        %v227 = vsel %vm202, %v222, 0.0
        %v228 = vadd.f32 %v226, %v227
        %v229 = vsel %vm202, %v223, 0.0
        %v230 = vadd.f32 %v228, %v229
        %v231 = vrot.slane %v230, 4
        %v232 = vadd.f32 %v230, %v231
        %v233 = vrot.slane %v232, 2
        %v234 = vadd.f32 %v232, %v233
        %v235 = vrot.slane %v234, 1
        %v236 = vadd.f32 %v234, %v235
        %v237 = vadd.f32 %v219, %v236
        %238 = vst.msk [vmem:[#allocation3] sm:$0x1] %vm217, %v237
        %v239 = vrot.slane %v149, 7
        %v240 = vrot.slane %v150, 7
        %v241 = vrot.slane %v151, 7
        %v242 = vrot.slane %v152, 7
        %vm243 = vcmp.lt.s32.totalorder %v183, 1
        %v244 = vsel %vm243, %v241, %v242
        %v245 = vsel %vm243, %v240, %v241
        %v246 = vsel %vm243, %v239, %v240
        %v247 = vsel %vm243, %v242, %v239
        %vm248 = vcmp.ge.s32.totalorder %v183, 1
        %vm249 = vmand %vm248, %vm185
        %v250 = vsub.f32 %v149, %v247
        %v251 = vsub.f32 %v150, %v246
        %v252 = vsub.f32 %v151, %v245
        %v253 = vsub.f32 %v152, %v244
        %v254 = vand.u32 2147483647, %v250
        %v255 = vand.u32 2147483647, %v251
        %v256 = vand.u32 2147483647, %v252
        %v257 = vand.u32 2147483647, %v253
        %v258 = vsel %vm249, %v254, 0.0
        %v259 = vsel %vm249, %v255, 0.0
        %v260 = vsel %vm249, %v256, 0.0
        %v261 = vsel %vm249, %v257, 0.0
        %v262 = vsel %vm202, %v258, 0.0
        %v263 = vsel %vm202, %v259, 0.0
        %v264 = vadd.f32 %v262, %v263
        %v265 = vsel %vm202, %v260, 0.0
        %v266 = vadd.f32 %v264, %v265
        %v267 = vsel %vm202, %v261, 0.0
        %v268 = vadd.f32 %v266, %v267
        %v269 = vrot.slane %v268, 4
        %v270 = vadd.f32 %v268, %v269
        %v271 = vrot.slane %v270, 2
        %v272 = vadd.f32 %v270, %v271
        %v273 = vrot.slane %v272, 1
        %v274 = vadd.f32 %v272, %v273
        %v275 = vld [vmem:[#allocation6] sm:$0xf]
        %v277 = vrot.slane %v275, 1
        %v278 = vrot.slane %v275, 2
        %v279 = vrot.slane %v275, 3
        %v284 = vsub.f32 %v149, %v275
        %v285 = vsub.f32 %v150, %v277
        %v286 = vsub.f32 %v151, %v278
        %v287 = vsub.f32 %v152, %v279
        %v288 = vand.u32 2147483647, %v284
        %v289 = vand.u32 2147483647, %v285
        %v290 = vand.u32 2147483647, %v286
        %v291 = vand.u32 2147483647, %v287
        %v292 = vld [vmem:[#allocation4] sm:$0x1]
        %v297 = vrot.slane %v289, 7
        %vm298 = vcmask 1041409
        %v299 = vsel %vm298, %v297, %v288
        %v300 = vrot.slane %v290, 6
        %vm301 = vcmask 1042434
        %v302 = vsel %vm301, %v300, %v299
        %v303 = vrot.slane %v291, 5
        %vm304 = vcmask 1043459
        %v305 = vsel %vm304, %v303, %v302
        %vm307 = vcmask 60416
        %v308 = vsel %vm307, %v305, 0.0
        %v309 = vrot.slane %v308, 4
        %v310 = vadd.f32 %v308, %v309
        %v311 = vrot.slane %v310, 2
        %v312 = vadd.f32 %v310, %v311
        %v313 = vrot.slane %v312, 1
        %v314 = vadd.f32 %v312, %v313
        %v315 = vadd.f32 %v274, %v314
        %v316 = vadd.f32 %v292, %v315
        %317 = vst.msk [vmem:[#allocation4] sm:$0x1] %vm217, %v316
        %v322 = vrot.slane %v150, 7
        %v323 = vrot.slane %v151, 6
        %v324 = vsel %vm298, %v323, %v322
        %v325 = vrot.slane %v152, 5
        %v326 = vsel %vm301, %v325, %v324
        %vm329 = vcmask 64519
        %330 = vst.msk [vmem:[#allocation6 - $0x7] sm:$0x80] %vm329, %v149
        %vm331 = vcmask 59392
        %332 = vst.msk [vmem:[#allocation6 + $0x1] sm:$0x7] %vm331, %v326
        %p333 = scmp.eq.s32.totalorder %s13, 2
        // Predicated region
        $region67: #{tpu_custom_call.1} parent=57 // pred_check
          %p334 = pneg %p333
        $region68: #{tpu_custom_call.1} parent=57 // pred_check_branch
          %336 = sbr.rel (%p334) target = $region70
        $region69: #{tpu_custom_call.1} parent=57 // pred_region
          %v337 = vld [vmem:[#allocation2] sm:$0x1]
          %v338 = vmul.f32 %v337, 0.0125
          %v339 = vld [vmem:[#allocation5] sm:$0x1]
          %v340 = vadd.f32 %v339, %v338
          %v341 = vld [vmem:[#allocation3] sm:$0x1]
          %v342 = vmul.f32 %v341, 0.0125
          %v343 = vmul.f32 %v338, %v338
          %v344 = vsub.f32 %v342, %v343
          %v345 = vmax.f32 %v344, 0.0
          %v346 = vrsqrt.pop %v345
          %v347 = vmul.f32 %v345, %v346
          %vm348 = vcmp.eq.f32.partialorder %v345, inf
          %v349 = vsel %vm348, %v345, %v347
          %vm350 = vcmp.eq.f32.partialorder %v345, 0.0
          %v351 = vand.u32 %v345, 2147483648
          %v352 = vsel %vm350, %v351, %v349
          %v353 = vld [vmem:[#allocation4] sm:$0x1]
          %v354 = vmul.f32 %v353, 0.013157895
          %v355 = vlaneseq
          %v356 = vand.u32 %v355, 127
          %vm357 = vcmp.eq.s32.totalorder %v356, %v183
          %v358 = vsel %vm357, 1, 0
          %v359 = vcvt.s32.f32 %v358
          %v361 = vlaneseq
          %v362 = vshrl.u32 %v361, 7
          %v363 = vsub.s32 0, %v362
          %v364 = vrot.slane %v340, %v363
          %v366 = vmul.f32 %v359, %v364
          %v367 = vsel %vm331, %v366, 0.0
          %368 = vadd.xlane.f32.xlu0 %v367
          %v369 = vpop.xlane.xlu0 %368
          %v371 = vlaneseq
          %v372 = vshrl.u32 %v371, 7
          %v373 = vsub.s32 0, %v372
          %v374 = vrot.slane %v352, %v373
          %v376 = vmul.f32 %v359, %v374
          %v377 = vsel %vm331, %v376, 0.0
          %378 = vadd.xlane.f32.xlu0 %v377
          %v379 = vpop.xlane.xlu0 %378
          %v381 = vlaneseq
          %v382 = vshrl.u32 %v381, 7
          %v383 = vsub.s32 0, %v382
          %v384 = vrot.slane %v354, %v383
          %v386 = vmul.f32 %v359, %v384
          %v387 = vsel %vm331, %v386, 0.0
          %388 = vadd.xlane.f32.xlu0 %v387
          %v389 = vpop.xlane.xlu0 %388
          loop: start=0, step=1, limit=20
          $region71: #{tpu_custom_call.1} parent=69 // loop_pre_header
            _
          $region72: #{tpu_custom_call.1} parent=69 // loop_header
            %s391 = sphi 0, %s395
            %p392 = scmp.ge.s32.totalorder %s391, 20
            %v396 = vphi %v369, %v441
            %v397 = vphi %v379, %v447
            %v398 = vphi %v389, %v453
          $region73: #{tpu_custom_call.1} parent=69 // loop_header_branch
            %394 = sbr.rel (%p392) target = $region77
          $region74: #{tpu_custom_call.1} parent=69 // loop_body
            %v399 = vsub.f32 %v396, %v364
            %v400 = vmul.f32 %v399, %v399
            %v401 = vadd.f32 %v400, 0.0
            %v402 = vsub.f32 %v397, %v374
            %v403 = vmul.f32 %v402, %v402
            %v404 = vadd.f32 %v401, %v403
            %v405 = vsub.f32 %v398, %v384
            %v406 = vmul.f32 %v405, %v405
            %v407 = vadd.f32 %v404, %v406
            %v408 = vsel %vm331, %v407, inf
            %v409 = vrot.slane %v408, 4
            %v410 = vmin.f32 %v408, %v409
            %v411 = vrot.slane %v410, 2
            %v412 = vmin.f32 %v410, %v411
            %v413 = vrot.slane %v412, 1
            %v414 = vmin.f32 %v412, %v413
            %vm415 = vcmp.le.f32.partialorder %v407, %v414
            %v416 = vsel %vm415, %v183, 3
            %v417 = vsel %vm331, %v416, 2147483647
            %v418 = vrot.slane %v417, 4
            %vm419 = vcmp.lt.s32.totalorder %v417, %v418
            %v420 = vsel %vm419, %v417, %v418
            %v421 = vrot.slane %v420, 2
            %vm422 = vcmp.lt.s32.totalorder %v420, %v421
            %v423 = vsel %vm422, %v420, %v421
            %v424 = vrot.slane %v423, 1
            %vm425 = vcmp.lt.s32.totalorder %v423, %v424
            %v426 = vsel %vm425, %v423, %v424
            %vm427 = vcmp.eq.s32.totalorder %v426, %v183
            %v428 = vsel %vm427, 1, 0
            %v429 = vcvt.s32.f32 %v428
            %v430 = vsel %vm331, %v429, 0.0
            %431 = vadd.xlane.f32.xlu0 %v430
            %v432 = vpop.xlane.xlu0 %431
            %v433 = vmax.f32 %v432, 1.0
            %vm434 = vcmp.gt.f32.partialorder %v432, 0.0
            %v435 = vmul.f32 %v429, %v364
            %v436 = vsel %vm331, %v435, 0.0
            %437 = vadd.xlane.f32.xlu0 %v436
            %v438 = vpop.xlane.xlu0 %437
            %v439 = vrcp.pop %v433
            %v440 = vmul.f32 %v438, %v439
            %v441 = vsel %vm434, %v440, %v396
            %v442 = vmul.f32 %v429, %v374
            %v443 = vsel %vm331, %v442, 0.0
            %444 = vadd.xlane.f32.xlu0 %v443
            %v445 = vpop.xlane.xlu0 %444
            %v446 = vmul.f32 %v445, %v439
            %v447 = vsel %vm434, %v446, %v397
            %v448 = vmul.f32 %v429, %v384
            %v449 = vsel %vm331, %v448, 0.0
            %450 = vadd.xlane.f32.xlu0 %v449
            %v451 = vpop.xlane.xlu0 %450
            %v452 = vmul.f32 %v451, %v439
            %v453 = vsel %vm434, %v452, %v398
          $region75: #{tpu_custom_call.1} parent=69 // loop_footer
            %s395 = sadd.s32 1, %s391
          $region76: #{tpu_custom_call.1} parent=69 // loop_footer_branch
            %390 = sbr.rel target = $region72
          $region77: #{tpu_custom_call.1} parent=69 // loop_exit
            _
          %v454 = vsub.f32 %v396, %v364
          %v455 = vmul.f32 %v454, %v454
          %v456 = vadd.f32 %v455, 0.0
          %v457 = vsub.f32 %v397, %v374
          %v458 = vmul.f32 %v457, %v457
          %v459 = vadd.f32 %v456, %v458
          %v460 = vsub.f32 %v398, %v384
          %v461 = vmul.f32 %v460, %v460
          %v462 = vadd.f32 %v459, %v461
          %v463 = vsel %vm331, %v462, inf
          %v464 = vrot.slane %v463, 4
          %v465 = vmin.f32 %v463, %v464
          %v466 = vrot.slane %v465, 2
          %v467 = vmin.f32 %v465, %v466
          %v468 = vrot.slane %v467, 1
          %v469 = vmin.f32 %v467, %v468
          %vm470 = vcmp.le.f32.partialorder %v462, %v469
          %v471 = vsel %vm470, %v183, 3
          %v472 = vsel %vm331, %v471, 2147483647
          %v473 = vrot.slane %v472, 4
          %vm474 = vcmp.lt.s32.totalorder %v472, %v473
          %v475 = vsel %vm474, %v472, %v473
          %v476 = vrot.slane %v475, 2
          %vm477 = vcmp.lt.s32.totalorder %v475, %v476
          %v478 = vsel %vm477, %v475, %v476
          %v479 = vrot.slane %v478, 1
          %vm480 = vcmp.lt.s32.totalorder %v478, %v479
          %v481 = vsel %vm480, %v478, %v479
          %482 = vst.msk [vmem:[#allocation8] sm:$0x1] %vm217, %v481
        $region70: #{tpu_custom_call.1} parent=57 // pred_fallthru
          _
        // Predicated region
        $region78: #{tpu_custom_call.1} parent=57 // pred_check
          %p483 = pneg %p52
        $region79: #{tpu_custom_call.1} parent=57 // pred_check_branch
          %485 = sbr.rel (%p483) target = $region81
        $region80: #{tpu_custom_call.1} parent=57 // pred_region
          %s487 = ssub.s32 16, 16
          %488 = vsyncadd [#allocation9], %s487
          %s490 = sshll.u32 [#allocation8], 4
          %s491 = int_to_ptr.vmem [resolvable:$true] %s490
          %493 = dma.vmem_to_hbm [thread:$0]  %s491, 16, %s1, [#allocation9]
        $region81: #{tpu_custom_call.1} parent=57 // pred_fallthru
          _
        // Predicated region
        $region82: #{tpu_custom_call.1} parent=57 // pred_check
          %p494 = pneg %p52
        $region83: #{tpu_custom_call.1} parent=57 // pred_check_branch
          %496 = sbr.rel (%p494) target = $region85
        $region84: #{tpu_custom_call.1} parent=57 // pred_region
          %497 = dma.done [#allocation9], 16
        $region85: #{tpu_custom_call.1} parent=57 // pred_fallthru
          _
      $region58: #{tpu_custom_call.1} parent=5 // pred_fallthru
        _
      %p498 = scmp.le.s32.totalorder 2, %s8
      // Predicated region
      $region86: #{tpu_custom_call.1} parent=5 // pred_check
        %p499 = pneg %p498
      $region87: #{tpu_custom_call.1} parent=5 // pred_check_branch
        %501 = sbr.rel (%p499) target = $region89
      $region88: #{tpu_custom_call.1} parent=5 // pred_region
        %s502 = ssub.s32 %s8, 2
      $region89: #{tpu_custom_call.1} parent=5 // pred_fallthru
        _
    $region6: #{tpu_custom_call.1} parent=1 // loop_footer
      %s12 = sadd.s32 1, %s8
    $region7: #{tpu_custom_call.1} parent=1 // loop_footer_branch
      %7 = sbr.rel target = $region3
    $region8: #{tpu_custom_call.1} parent=1 // loop_exit
      _
    %503 = vsyncpa [#allocation9], 1
    %s504 = scalar_lea.sflag [#allocation9], 1
    %505 = vsyncpa %s504, 1

</llo_original>
